<compile_context>
chip_gen: v5e
topology: v5e:2x2
jax: 0.10.0
libtpu: 0.0.40
codegen_flags: <defaults>
</compile_context>

<pallas_src>
import functools
import math

import jax
import jax.numpy as jnp
from jax.experimental import pallas as pl
from jax.experimental.pallas import tpu as pltpu

_MiB = 1024 * 1024


def make_positional_encoding(d_model, max_len=5000):
    """Deterministic buffer setup mirroring PyTorch PositionalEncoding.__init__."""
    position = jnp.arange(0, max_len, dtype=jnp.float32)[:, None]             # (max_len, 1)
    div_term = jnp.exp(
        jnp.arange(0, d_model, 2, dtype=jnp.float32) * (-math.log(10000.0) / d_model)
    )                                                                          # (d_model/2,)
    pe = jnp.zeros((max_len, d_model), dtype=jnp.float32)
    pe = pe.at[:, 0::2].set(jnp.sin(position * div_term))
    pe = pe.at[:, 1::2].set(jnp.cos(position * div_term))
    # unsqueeze(0).transpose(0,1) -> (max_len, 1, d_model), matching the PyTorch buffer.
    return pe[:, None, :]


def _round_up(v, m):
    return ((v + m - 1) // m) * m


def _sublane(itemsize):
    # dtype-aware sublane packing: 8 rows for 4B, 16 for 2B, 32 for 1B dtypes.
    return max(8, 32 // max(int(itemsize), 1))


def _choose_tiles(S, B, D, itemsize, target_block_bytes):
    """Pick (tS, tBD) for the flattened (S, B*D) view, ~target_block_bytes per block."""
    BD = B * D
    sub = _sublane(itemsize)
    lane_full = _round_up(BD, 128)
    if sub * lane_full * itemsize <= target_block_bytes:
        tBD = BD                                    # full lane extent (common case)
    else:
        # One minimal-height full-lane block would blow the budget: tile the
        # flattened axis in lcm(D, 128) chunks (batch- and lane-aligned).
        step = (D * 128) // math.gcd(D, 128)
        n = max(1, target_block_bytes // (sub * step * itemsize))
        tBD = min(n * step, BD)
    lane_padded = _round_up(tBD, 128)
    tS = (target_block_bytes // (lane_padded * itemsize)) // sub * sub
    tS = max(sub, tS)
    if tS >= S:
        tS = S                                      # full extent is always legal
    return tS, tBD


def _tile_lanes(v, rep):
    """Repeat v (rows, D) `rep` times along lanes -> (rows, rep*D).

    Log-doubling concatenate: O(log rep) well-supported Mosaic concat ops,
    avoids generic minor-dim reshape lowering. Order of pieces is irrelevant
    because every piece is itself a whole number of pe repetitions.
    """
    if rep == 1:
        return v
    out = None
    piece = v
    r = rep
    while r > 0:
        if r & 1:
            out = piece if out is None else jnp.concatenate([out, piece], axis=-1)
        r >>= 1
        if r:
            piece = jnp.concatenate([piece, piece], axis=-1)
    return out


def _add_pe_kernel(x_ref, pe_ref, o_ref, *, rep):
    # x_ref/o_ref: (tS, tBD); pe_ref: (tS, D); tBD == rep * D.
    o_ref[...] = (x_ref[...] + _tile_lanes(pe_ref[...], rep)).astype(o_ref.dtype)


def positional_encoding_forward(x, pe, *, seq_tile=None,
                                target_block_bytes=6 * _MiB):
    """x: (S, B, D); pe: (max_len, 1, D). Returns x + pe[:S] (PyTorch forward)."""
    S, B, D = x.shape
    max_len = pe.shape[0]
    assert S <= max_len, f"sequence length {S} exceeds max_len {max_len}"
    assert pe.shape[-1] == D

    itemsize = x.dtype.itemsize
    BD = B * D
    sub = _sublane(itemsize)

    tS, tBD = _choose_tiles(S, B, D, itemsize, target_block_bytes)
    if seq_tile is not None:
        tS = S if seq_tile >= S else max(sub, (seq_tile // sub) * sub)
    rep = tBD // D                                   # tBD is always a multiple of D

    # Free, layout-preserving views; pe matched to x's dtype (halves pe HBM
    # read for bf16 and keeps the in-kernel add / store dtype-consistent).
    x2 = x.reshape(S, BD)
    pe2 = pe.reshape(max_len, D).astype(x.dtype)     # full buffer: no pe[:S] copy

    # VMEM budget from the actual (padded, double-buffered) block footprint.
    x_block = _round_up(tS, sub) * _round_up(tBD, 128) * itemsize
    pe_block = _round_up(tS, sub) * _round_up(D, 128) * itemsize
    footprint = 4 * x_block + 2 * pe_block           # 2x(in) + 2x(out) + 2x(pe)
    vmem_limit = min(max(footprint + 4 * _MiB, 16 * _MiB), 40 * _MiB)

    grid = (pl.cdiv(S, tS), pl.cdiv(BD, tBD))

    out2 = pl.pallas_call(
        functools.partial(_add_pe_kernel, rep=rep),
        out_shape=jax.ShapeDtypeStruct((S, BD), x.dtype),
        grid_spec=pl.GridSpec(
            grid=grid,
            in_specs=[
                pl.BlockSpec((tS, tBD), lambda i, j: (i, j)),
                pl.BlockSpec((tS, D), lambda i, j: (i, 0)),
            ],
            out_specs=pl.BlockSpec((tS, tBD), lambda i, j: (i, j)),
        ),
        compiler_params=pltpu.CompilerParams(
            dimension_semantics=("parallel", "parallel"),
            vmem_limit_bytes=vmem_limit,
        ),
        cost_estimate=pl.CostEstimate(
            flops=S * B * D,
            transcendentals=0,
            bytes_accessed=2 * S * BD * itemsize + S * D * itemsize,
        ),
    )(x2, pe2)

    return out2.reshape(S, B, D)


if __name__ == "__main__":
    key = jax.random.PRNGKey(0)
    seq_len, batch, d_model = 40, 2, 32
    max_len = 64

    x = jax.random.normal(key, (seq_len, batch, d_model), dtype=jnp.float32)
    pe = make_positional_encoding(d_model, max_len=max_len)

    # Multi-step grid with a partial final tile (40 = 16 + 16 + 8) to exercise
    # the tiled / pipelined / masked-edge path even at demo scale.
    out_tiled = jax.block_until_ready(positional_encoding_forward(x, pe, seq_tile=16))
    # Auto tile-size path (full-extent block at this small size).
    out_auto = jax.block_until_ready(positional_encoding_forward(x, pe))

    ref = x + pe[:seq_len]
    assert out_tiled.shape == (seq_len, batch, d_model)
    assert jnp.allclose(out_tiled, ref, atol=1e-6), "mismatch vs reference (tiled)"
    assert jnp.allclose(out_auto, ref, atol=1e-6), "mismatch vs reference (auto tile)"

    print("KERNEL_OK")
</pallas_src>

<mosaic_0001>
module attributes {stable_mosaic.version = 11 : i64} {
  func.func @_add_pe_kernel(%arg0: i32, %arg1: i32, %arg2: memref<16x64xf32, #tpu.memory_space<vmem>>, %arg3: memref<16x32xf32, #tpu.memory_space<vmem>>, %arg4: memref<16x64xf32, #tpu.memory_space<vmem>>) attributes {dimension_semantics = [#tpu.dimension_semantics<parallel>, #tpu.dimension_semantics<parallel>], iteration_bounds = array<i64: 3, 1>, scalar_prefetch = 0 : i64, scratch_operands = 0 : i64, tpu.core_type = #tpu.core_type<tc>, window_params = [{transform_indices = @transform_0, window_bounds = array<i64: 16, 64>}, {transform_indices = @transform_1, window_bounds = array<i64: 16, 32>}, {transform_indices = @transform_2, window_bounds = array<i64: 16, 64>}]} {
    %c0 = arith.constant 0 : index
    %c0_0 = arith.constant 0 : index
    %0 = vector.load %arg2[%c0, %c0_0] : memref<16x64xf32, #tpu.memory_space<vmem>>, vector<16x64xf32>
    %c0_1 = arith.constant 0 : index
    %c0_2 = arith.constant 0 : index
    %1 = vector.load %arg3[%c0_1, %c0_2] : memref<16x32xf32, #tpu.memory_space<vmem>>, vector<16x32xf32>
    %2 = tpu.concatenate %1, %1 in 1 : vector<16x32xf32>, vector<16x32xf32> -> vector<16x64xf32>
    %3 = arith.addf %0, %2 : vector<16x64xf32>
    %c0_3 = arith.constant 0 : index
    %c0_4 = arith.constant 0 : index
    %4 = vector.load %arg4[%c0_3, %c0_4] : memref<16x64xf32, #tpu.memory_space<vmem>>, vector<16x64xf32>
    tpu.vector_store %arg4[%c0_3, %c0_4], %3 {strides = array<i32>} : memref<16x64xf32, #tpu.memory_space<vmem>>, vector<16x64xf32>,
    return
  }
  func.func @transform_0(%arg0: i32, %arg1: i32) -> (i32, i32) {
    %c0_i32 = arith.constant 0 : i32
    return %arg0, %arg1 : i32, i32
  }
  func.func @transform_1(%arg0: i32, %arg1: i32) -> (i32, i32) {
    %c0_i32 = arith.constant 0 : i32
    %c0_i32_0 = arith.constant 0 : i32
    return %arg0, %c0_i32 : i32, i32
  }
  func.func @transform_2(%arg0: i32, %arg1: i32) -> (i32, i32) {
    %c0_i32 = arith.constant 0 : i32
    return %arg0, %arg1 : i32, i32
  }
}

</mosaic_0001>

<llo_original>
// kernel: tpu_custom_call.1
$region0: #{tpu_custom_call.1}
  #allocation0 [shape = 'u32[]', space=smem, size = 0x4, offset = 0x4, fixed_abs, tag = 'smem constant byte address 0x4 - core index']
  #allocation1 [shape = 'u32[72,128]{1,0:T(1,128)}', space=vmem, size = 0x9000, scoped, tag = 'internal scratch']
  %s0 = inlined_call_operand.vmem [shape: f32[40,64], index: 0, kind: input, shape index: {}]
  %s1 = inlined_call_operand.vmem [shape: f32[64,32], index: 1, kind: input, shape index: {}]
  %s2 = inlined_call_operand.hbm [shape: f32[40,64], index: 2, kind: output, shape index: {}]
  %s3 = sld [smem:[#allocation0]]
  $region41: #{tpu_custom_call.1} parent=0
    _
  %s5 = ssub.s32 1, %s3
  %s6 = scalar_select 0, %s5, %s3
  $region1: #{tpu_custom_call.1} parent=0
    #allocation2 [shape = 'u8[16384]{0}', space=vmem, size = 0x4000, scoped, tag = 'output window, operand 0']
    #allocation3 [shape = 's32[2]{0}', space=sflag, size = 0x8, scoped, tag = 'scoped memory for tpu_custom_call.1']
    %7 = vsyncpa [#allocation3], 0
    %s8 = scalar_lea.sflag [#allocation3], 1
    %9 = vsyncpa %s8, 0
    loop: start=0, step=1, limit=5
    $region2: #{tpu_custom_call.1} parent=1 // loop_pre_header
      _
    $region3: #{tpu_custom_call.1} parent=1 // loop_header
      %s11 = sphi 0, %s15
      %p12 = scmp.ge.s32.totalorder %s11, 5
      %s18 = sphi 0, %s30
      %s19 = sphi 0, %s26
      %s20 = sphi 0, %s18
      %s21 = sphi 0, %s19
      %s22 = sphi 0, %s20
      %s23 = sphi 0, %s21
      %s35 = sphi 0, %s37
      %s38 = sphi 0, %s35
      %s39 = sphi 0, %s38
      %s55 = sphi 0, %s39
      %s61 = sphi 0, %s63
      %s64 = sphi 0, %s61
      %s65 = sphi 0, %s64
      %s81 = sphi 0, %s65
      %s89 = sphi 0, %s91
      %s92 = sphi 0, %s89
      %s93 = sphi 0, %s92
      %s109 = sphi 0, %s93
    $region4: #{tpu_custom_call.1} parent=1 // loop_header_branch
      %14 = sbr.rel (%p12) target = $region8
    $region5: #{tpu_custom_call.1} parent=1 // loop_body
      %s16 = ssub.s32 %s11, 1
      %s17 = ssub.s32 %s11, 2
      %s24 = sadd.s32 1, %s19
      %p25 = scmp.ge.s32.totalorder %s24, 1
      %s26 = scalar_select %p25, 0, %s24
      %s27 = sadd.s32 1, %s18
      %s28 = scalar_select %p25, %s27, %s18
      %p29 = scmp.ge.s32.totalorder %s28, 3
      %s30 = scalar_select %p29, 0, %s28
      %s31 = ssub.s32 %s18, %s30
      %s32 = ssub.s32 %s19, %s26
      %s33 = sor.u32 %s31, %s32
      %p34 = scmp.eq.s32.totalorder %s33, 0
      %s36 = sadd.s32 %s35, 1
      %s37 = scalar_select %p34, %s35, %s36
      %p40 = pneg %p34
      %p41 = scmp.eq.s32.totalorder %s11, 2
      %p42 = por %p40, %p41
      %p43 = scmp.ne.s32.totalorder %s35, %s38
      %p44 = scmp.eq.s32.totalorder %s11, 0
      %p45 = por %p43, %p44
      %p46 = scmp.ne.s32.totalorder %s35, %s38
      %p47 = scmp.eq.s32.totalorder %s16, 2
      %p48 = por %p46, %p47
      %p49 = scmp.ne.s32.totalorder %s38, %s39
      %p50 = scmp.eq.s32.totalorder %s16, 0
      %p51 = por %p49, %p50
      %p52 = scmp.ne.s32.totalorder %s38, %s39
      %p53 = scmp.eq.s32.totalorder %s17, 2
      %p54 = por %p52, %p53
      %p56 = scmp.ne.s32.totalorder %s39, %s55
      %p57 = scmp.eq.s32.totalorder %s17, 0
      %p58 = por %p56, %p57
      %s59 = ssub.s32 %s18, %s30
      %p60 = scmp.eq.s32.totalorder %s59, 0
      %s62 = sadd.s32 %s61, 1
      %s63 = scalar_select %p60, %s61, %s62
      %p66 = pneg %p60
      %p67 = scmp.eq.s32.totalorder %s11, 2
      %p68 = por %p66, %p67
      %p69 = scmp.ne.s32.totalorder %s61, %s64
      %p70 = scmp.eq.s32.totalorder %s11, 0
      %p71 = por %p69, %p70
      %p72 = scmp.ne.s32.totalorder %s61, %s64
      %p73 = scmp.eq.s32.totalorder %s16, 2
      %p74 = por %p72, %p73
      %p75 = scmp.ne.s32.totalorder %s64, %s65
      %p76 = scmp.eq.s32.totalorder %s16, 0
      %p77 = por %p75, %p76
      %p78 = scmp.ne.s32.totalorder %s64, %s65
      %p79 = scmp.eq.s32.totalorder %s17, 2
      %p80 = por %p78, %p79
      %p82 = scmp.ne.s32.totalorder %s65, %s81
      %p83 = scmp.eq.s32.totalorder %s17, 0
      %p84 = por %p82, %p83
      %s85 = ssub.s32 %s18, %s30
      %s86 = ssub.s32 %s19, %s26
      %s87 = sor.u32 %s85, %s86
      %p88 = scmp.eq.s32.totalorder %s87, 0
      %s90 = sadd.s32 %s89, 1
      %s91 = scalar_select %p88, %s89, %s90
      %p94 = pneg %p88
      %p95 = scmp.eq.s32.totalorder %s11, 2
      %p96 = por %p94, %p95
      %p97 = scmp.ne.s32.totalorder %s89, %s92
      %p98 = scmp.eq.s32.totalorder %s11, 0
      %p99 = por %p97, %p98
      %p100 = scmp.ne.s32.totalorder %s89, %s92
      %p101 = scmp.eq.s32.totalorder %s16, 2
      %p102 = por %p100, %p101
      %p103 = scmp.ne.s32.totalorder %s92, %s93
      %p104 = scmp.eq.s32.totalorder %s16, 0
      %p105 = por %p103, %p104
      %p106 = scmp.ne.s32.totalorder %s92, %s93
      %p107 = scmp.eq.s32.totalorder %s17, 2
      %p108 = por %p106, %p107
      %p110 = scmp.ne.s32.totalorder %s93, %s109
      %p111 = scmp.eq.s32.totalorder %s17, 0
      %p112 = por %p110, %p111
      %p113 = scmp.le.s32.totalorder 1, %s11
      %p114 = scmp.lt.s32.totalorder %s11, 4
      %p115 = pnand %p113, %p114
      %p116 = pneg %p115
      // Predicated region
      $region9: #{tpu_custom_call.1} parent=5 // pred_check
        _
      $region10: #{tpu_custom_call.1} parent=5 // pred_check_branch
        %118 = sbr.rel (%p115) target = $region12
      $region11: #{tpu_custom_call.1} parent=5 // pred_region
        %s119 = ssub.s32 %s11, 1
      $region12: #{tpu_custom_call.1} parent=5 // pred_fallthru
        _
      %p120 = scmp.lt.s32.totalorder %s11, 3
      // Predicated region
      $region13: #{tpu_custom_call.1} parent=5 // pred_check
        %p121 = pneg %p120
      $region14: #{tpu_custom_call.1} parent=5 // pred_check_branch
        %123 = sbr.rel (%p121) target = $region16
      $region15: #{tpu_custom_call.1} parent=5 // pred_region
        // Predicated region
        $region17: #{tpu_custom_call.1} parent=15 // pred_check
          %p124 = pneg %p45
        $region18: #{tpu_custom_call.1} parent=15 // pred_check_branch
          %126 = sbr.rel (%p124) target = $region20
        $region19: #{tpu_custom_call.1} parent=15 // pred_region
          %s127 = smul.u32 2, %s18
          %s128 = ssub.s32 5, %s127
          %p129 = scmp.lt.s32.totalorder %s128, 2
          %s130 = scalar_select %p129, %s128, 2
          %s131 = smul.u32 8, %s130
          %p132 = scmp.lt.s32.totalorder %s127, 4
          %s133 = scalar_select %p132, %s127, 4
          %p134 = scmp.lt.s32.totalorder %s19, 0
          %s135 = scalar_select %p134, %s19, 0
          %s136 = sadd.s32 %s135, %s133
          %s137 = smul.addr %s136, 8
          %s138 = scalar_lea.vmem %s0, %s137
          %s139 = smul.u32 2, %s18
          %s140 = ssub.s32 5, %s139
          %p141 = scmp.lt.s32.totalorder %s140, 2
          %s142 = scalar_select %p141, %s140, 2
          %s143 = smul.u32 8, %s142
        $region20: #{tpu_custom_call.1} parent=15 // pred_fallthru
          _
        // Predicated region
        $region21: #{tpu_custom_call.1} parent=15 // pred_check
          %p144 = pneg %p71
        $region22: #{tpu_custom_call.1} parent=15 // pred_check_branch
          %146 = sbr.rel (%p144) target = $region24
        $region23: #{tpu_custom_call.1} parent=15 // pred_region
          %s147 = smul.u32 2, %s18
          %p148 = scmp.lt.s32.totalorder %s147, 7
          %s149 = scalar_select %p148, %s147, 7
          %s150 = smul.addr %s149, 8
          %s151 = scalar_lea.vmem %s1, %s150
          %s152 = smul.u32 2, %s18
        $region24: #{tpu_custom_call.1} parent=15 // pred_fallthru
          _
      $region16: #{tpu_custom_call.1} parent=5 // pred_fallthru
        _
      %p153 = scmp.le.s32.totalorder 1, %s11
      %p154 = scmp.lt.s32.totalorder %s11, 4
      %p155 = pnand %p153, %p154
      %p156 = pneg %p155
      // Predicated region
      $region25: #{tpu_custom_call.1} parent=5 // pred_check
        _
      $region26: #{tpu_custom_call.1} parent=5 // pred_check_branch
        %158 = sbr.rel (%p155) target = $region28
      $region27: #{tpu_custom_call.1} parent=5 // pred_region
        %s159 = ssub.s32 %s11, 1
        %s160 = smul.u32 2, %s20
        %s161 = ssub.s32 5, %s160
        %p162 = scmp.lt.s32.totalorder %s161, 2
        %s163 = scalar_select %p162, %s161, 2
        %s164 = smul.u32 8, %s163
        %p165 = scmp.lt.s32.totalorder %s160, 4
        %s166 = scalar_select %p165, %s160, 4
        %p167 = scmp.lt.s32.totalorder %s21, 0
        %s168 = scalar_select %p167, %s21, 0
        %s169 = sadd.s32 %s168, %s166
        %s170 = smul.addr %s169, 8
        %s171 = scalar_lea.vmem %s0, %s170
        %p172 = pneg %p51
        %p173 = pneg %p48
        %s174 = smul.u32 2, %s20
        %p175 = scmp.lt.s32.totalorder %s174, 7
        %s176 = scalar_select %p175, %s174, 7
        %s177 = smul.addr %s176, 8
        %s178 = scalar_lea.vmem %s1, %s177
        %p179 = pneg %p77
        %p180 = pneg %p74
        %p181 = pneg %p105
        %p182 = pneg %p102
        %s183 = sand.u32 %s92, 1
        %s184 = scalar_lea.sflag [#allocation3], %s183
        %s185 = sand.u32 %s92, 1
        %s186 = smul.addr %s185, 16
        %s187 = scalar_lea.vmem [#allocation2], %s186
        %s188 = smul.u32 2, %s20
        %s189 = ssub.s32 5, %s188
        %p190 = scmp.lt.s32.totalorder %s189, 2
        %s191 = scalar_select %p190, %s189, 2
        %s192 = smul.u32 8, %s191
        %p193 = scmp.lt.s32.totalorder %s188, 4
        %s194 = scalar_select %p193, %s188, 4
        %p195 = scmp.lt.s32.totalorder %s21, 0
        %s196 = scalar_select %p195, %s21, 0
        %s197 = sadd.s32 %s196, %s194
        %s198 = smul.addr %s197, 8
        %s199 = scalar_lea.vmem %s0, %s198
        %s200 = smul.u32 2, %s20
        %s201 = ssub.s32 5, %s200
        %p202 = scmp.lt.s32.totalorder %s201, 2
        %s203 = scalar_select %p202, %s201, 2
        %s204 = smul.u32 8, %s203
        %s205 = smul.u32 2, %s20
        %p206 = scmp.lt.s32.totalorder %s205, 7
        %s207 = scalar_select %p206, %s205, 7
        %s208 = smul.addr %s207, 8
        %s209 = scalar_lea.vmem %s1, %s208
        %s210 = smul.u32 2, %s20
        %s211 = smul.u32 2, %s20
        %s212 = ssub.s32 5, %s211
        %p213 = scmp.lt.s32.totalorder %s212, 2
        %s214 = scalar_select %p213, %s212, 2
        %s215 = smul.u32 8, %s214
        %v216 = vld [vmem:[%s199] sm:$0xff]
        %v217 = vld [vmem:[%s199 + $0x8] sm:$0xff]
        %v218 = vld [vmem:[%s209] sm:$0xff]
        %v219 = vld [vmem:[%s209 + $0x8] sm:$0xff]
        %222 = vrot.lane.b32.xlu0 %v218, 32
        %v223 = vpop.permute.xlu0 %222
        %224 = vrot.lane.b32.xlu0 %v219, 32
        %v225 = vpop.permute.xlu0 %224
        %vm228 = vcmask 261120
        %v229 = vsel %vm228, %v218, %v223
        %v230 = vsel %vm228, %v219, %v225
        %v231 = vadd.f32 %v216, %v229
        %v232 = vadd.f32 %v217, %v230
        %vm233 = vcmask 523264
        %234 = vst.msk [vmem:[%s187] sm:$0xff] %vm233, %v231
        %235 = vst.msk [vmem:[%s187 + $0x8] sm:$0xff] %vm233, %v232
        %s236 = sand.u32 %s92, 1
        %s237 = scalar_lea.sflag [#allocation3], %s236
        %s238 = sand.u32 %s92, 1
        %s239 = smul.addr %s238, 16
        %s240 = scalar_lea.vmem [#allocation2], %s239
        // Predicated region
        $region29: #{tpu_custom_call.1} parent=27 // pred_check
          %p241 = pneg %p102
        $region30: #{tpu_custom_call.1} parent=27 // pred_check_branch
          %243 = sbr.rel (%p241) target = $region32
        $region31: #{tpu_custom_call.1} parent=27 // pred_region
          %s244 = smul.u32 2, %s20
          %s245 = ssub.s32 5, %s244
          %p246 = scmp.lt.s32.totalorder %s245, 2
          %s247 = scalar_select %p246, %s245, 2
          %s248 = smul.u32 8, %s247
          %s249 = ssub.s32 16, %s248
          %s250 = sshll.u32 %s249, 4
          %251 = vsyncadd %s237, %s250
          %p252 = scmp.ne.s32.totalorder 0, %s248
          %s253 = sadd.s32 %s21, %s244
          %s254 = smul.addr %s253, 8
          %s255 = scalar_lea.hbm %s2, %s254
          %s256 = smul.u32 8, %s247
          %s257 = sshll.u32 %s240, 4
          %s258 = int_to_ptr.vmem [resolvable:$true] %s257
          %s259 = sshll.u32 %s255, 4
          %s260 = int_to_ptr.hbm [resolvable:$true] %s259
          %s261 = sshll.u32 %s256, 4
          %265 = dma.vmem_to_hbm [thread:$0]  (%p252), %s258, %s261, %s260, %s237, 128, 128, 8
        $region32: #{tpu_custom_call.1} parent=27 // pred_fallthru
          _
      $region28: #{tpu_custom_call.1} parent=5 // pred_fallthru
        _
      %p266 = scmp.le.s32.totalorder 2, %s11
      // Predicated region
      $region33: #{tpu_custom_call.1} parent=5 // pred_check
        %p267 = pneg %p266
      $region34: #{tpu_custom_call.1} parent=5 // pred_check_branch
        %269 = sbr.rel (%p267) target = $region36
      $region35: #{tpu_custom_call.1} parent=5 // pred_region
        %s270 = ssub.s32 %s11, 2
        // Predicated region
        $region37: #{tpu_custom_call.1} parent=35 // pred_check
          %p271 = pneg %p108
        $region38: #{tpu_custom_call.1} parent=35 // pred_check_branch
          %273 = sbr.rel (%p271) target = $region40
        $region39: #{tpu_custom_call.1} parent=35 // pred_region
          %s274 = sand.u32 %s93, 1
          %s275 = scalar_lea.sflag [#allocation3], %s274
          %s276 = sand.u32 %s93, 1
          %s277 = smul.addr %s276, 16
          %s278 = scalar_lea.vmem [#allocation2], %s277
          %280 = dma.done %s275, 256
        $region40: #{tpu_custom_call.1} parent=35 // pred_fallthru
          _
      $region36: #{tpu_custom_call.1} parent=5 // pred_fallthru
        _
    $region6: #{tpu_custom_call.1} parent=1 // loop_footer
      %s15 = sadd.s32 1, %s11
    $region7: #{tpu_custom_call.1} parent=1 // loop_footer_branch
      %10 = sbr.rel target = $region3
    $region8: #{tpu_custom_call.1} parent=1 // loop_exit
      _
    %281 = vsyncpa [#allocation3], 1
    %s282 = scalar_lea.sflag [#allocation3], 1
    %283 = vsyncpa %s282, 1

</llo_original>
